<compile_context>
chip_gen: v7x
topology: tpu7x:2x2x1
jax: 0.10.0
libtpu: 0.0.40
codegen_flags: <defaults>
</compile_context>

<pallas_src>
import jax
import jax.numpy as jnp
from jax.experimental import pallas as pl
from jax.experimental.pallas import tpu as pltpu


MAX_NORM = 1.0       # nn.Embedding(max_norm=True) -> max_norm == 1.0, p == 2
RENORM_EPS = 1e-7    # matches ATen embedding_renorm_


def _gather_kernel(idx_ref, tbl_ref, out_ref):
    """One block-diagonal one-hot matmul per token tile.

    idx_ref : (TP, P)      int32   -- P consecutive tokens per row, pre-offset by g*V
    tbl_ref : (P*V, P*E)   float32 -- block-diagonal renormalized table, VMEM resident
    out_ref : (TP, P*E)    float32 -- lane-dense packed output slab (one unmasked store)
    """
    ids = idx_ref[...]                                   # (TP, P)
    tbl = tbl_ref[...]                                   # (P*V, P*E)
    tp, p = ids.shape
    kdim = tbl.shape[0]                                  # P*V

    # Single (TP, P*V) one-hot: P broadcast-compares OR'd together, one cast.
    iota = jax.lax.broadcasted_iota(jnp.int32, (tp, kdim), 1)
    hot = iota == ids[:, 0:1]
    for g in range(1, p):                                # static, tiny (p = 128 // E)
        hot = hot | (iota == ids[:, g:g + 1])
    onehot = hot.astype(jnp.float32)

    # One MXU matmul per tile; exact in f32 (multiplies only by 0.0 / 1.0).
    out_ref[...] = jnp.dot(onehot, tbl,
                           preferred_element_type=jnp.float32).astype(out_ref.dtype)


def gene_extractor_forward(x_indices, embedding_weight, *, block_tokens=8192):
    """
    x_indices        : int array, any shape (e.g. (B, L)), values in [0, gene_width)
    embedding_weight : (gene_width, gene_embed) float32
    returns          : (prod(x_indices.shape), gene_embed) float32
                       == torch.reshape(Embedding(max_norm=True)(x), (-1, gene_embed))  (eval mode)
    """
    v, e = embedding_weight.shape
    flat_idx = x_indices.reshape(-1).astype(jnp.int32)
    n_tok = int(flat_idx.shape[0])

    # ---- 1) table prep in plain jnp (one-time, XLA-fused; no extra kernel launch) ----
    w = embedding_weight.astype(jnp.float32)
    norm = jnp.sqrt(jnp.sum(w * w, axis=-1, keepdims=True))
    scale = jnp.where(norm > MAX_NORM, MAX_NORM / (norm + RENORM_EPS), 1.0)
    tbl = w * scale                                                  # (V, E) renormalized

    pack = 128 // e if (e <= 128 and 128 % e == 0) else 1            # tokens per 128-lane row
    tbl_bd = jnp.kron(jnp.eye(pack, dtype=jnp.float32), tbl)         # (P*V, P*E) block-diagonal

    # ---- 2) token padding / tiling (rows of P packed tokens; TP is a multiple of 8) ----
    n_rows = -(-n_tok // pack)
    target_rows = max(8, (int(block_tokens) // pack // 8) * 8)
    if n_rows <= target_rows:                    # avoid gross padding for tiny inputs
        tp = -(-n_rows // 8) * 8
        n_rows_pad = tp
    else:
        tp = target_rows
        n_rows_pad = -(-n_rows // tp) * tp
    n_tok_pad = n_rows_pad * pack
    n_blocks = n_rows_pad // tp

    idx_pad = jnp.pad(flat_idx, (0, n_tok_pad - n_tok))              # pad with index 0
    offs = (jnp.arange(pack, dtype=jnp.int32) * v)[None, :]
    idx_off = idx_pad.reshape(n_rows_pad, pack) + offs               # pre-offset by group*V

    # ---- 3) VMEM budget: double-buffered tiles + in-kernel temporaries, capped at 32 MiB
    #         (safe on v7x's 64 MiB per-TC VMEM and on v5e/v6e) ----
    tbl_bytes = pack * v * pack * e * 4
    idx_tile = tp * pack * 4
    out_tile = tp * pack * e * 4
    onehot_tmp = tp * pack * v * 4                                   # one (TP, P*V) f32 temp
    need = 2 * tbl_bytes + 2 * idx_tile + 2 * out_tile + 4 * onehot_tmp + out_tile + (4 << 20)
    vmem_limit = int(min(max(need, 16 << 20), 32 << 20))

    out_packed = pl.pallas_call(
        _gather_kernel,
        out_shape=jax.ShapeDtypeStruct((n_rows_pad, pack * e), jnp.float32),
        grid=(n_blocks,),
        in_specs=[
            pl.BlockSpec((tp, pack), lambda i: (i, 0)),              # pre-offset index tile
            pl.BlockSpec((pack * v, pack * e), lambda i: (0, 0)),    # resident packed table
        ],
        out_specs=pl.BlockSpec((tp, pack * e), lambda i: (i, 0)),    # lane-dense (TP, 128) slab
        compiler_params=pltpu.CompilerParams(
            # Token-block axis is embarrassingly parallel (lets v7x shard it over its 2 TCs;
            # harmless on single-TC v5e/v6e).
            dimension_semantics=("parallel",),
            vmem_limit_bytes=vmem_limit,
        ),
    )(idx_off, tbl_bd)

    # Unpack to the module's public layout (n_tok, gene_embed).  The reshape is a row-major
    # bitcast of the packed slab; only trailing pad rows are sliced off (skipped when unpadded).
    out = out_packed.reshape(n_tok_pad, e)
    if n_tok_pad != n_tok:
        out = out[:n_tok]

    # dropout (eval mode) -> identity
    return out


if __name__ == "__main__":
    hyperparameters = {
        "gene_width": 64,   # vocab size
        "gene_embed": 32,   # embedding dim
        "dropout": 0.1,
    }

    key = jax.random.PRNGKey(0)
    k_w, k_x = jax.random.split(key)

    # nn.Embedding default init: N(0, 1); some rows have norm > 1 so the renorm branch is exercised.
    embedding_weight = jax.random.normal(
        k_w, (hyperparameters["gene_width"], hyperparameters["gene_embed"]),
        dtype=jnp.float32)

    # Input token indices: batch=2, seq=8
    x = jax.random.randint(k_x, (2, 8), 0, hyperparameters["gene_width"], dtype=jnp.int32)

    out = gene_extractor_forward(x, embedding_weight)
    out = jax.block_until_ready(out)

    # Pure-JAX reference (renorm gathered rows == renorm table then gather).
    rows = embedding_weight[x.reshape(-1)]
    norms = jnp.sqrt(jnp.sum(rows * rows, axis=-1, keepdims=True))
    scale = jnp.where(norms > MAX_NORM, MAX_NORM / (norms + RENORM_EPS), 1.0)
    ref = rows * scale

    assert out.shape == (x.size, hyperparameters["gene_embed"]), out.shape
    assert jnp.allclose(out, ref, atol=1e-5, rtol=1e-5), float(jnp.max(jnp.abs(out - ref)))

    print("KERNEL_OK")
</pallas_src>

<mosaic_0001>
module attributes {stable_mosaic.version = 11 : i64} {
  func.func @_gather_kernel(%arg0: i32, %arg1: memref<8x4xi32, #tpu.memory_space<vmem>>, %arg2: memref<256x128xf32, #tpu.memory_space<vmem>>, %arg3: memref<8x128xf32, #tpu.memory_space<vmem>>) attributes {dimension_semantics = [#tpu.dimension_semantics<parallel>], iteration_bounds = array<i64: 1>, scalar_prefetch = 0 : i64, scratch_operands = 0 : i64, tpu.core_type = #tpu.core_type<tc>, window_params = [{transform_indices = @transform_0, window_bounds = array<i64: 8, 4>}, {pipeline_mode = #tpu.pipeline_mode<synchronous>, transform_indices = @transform_1, window_bounds = array<i64: 256, 128>}, {transform_indices = @transform_2, window_bounds = array<i64: 8, 128>}]} {
    %c0 = arith.constant 0 : index
    %c0_0 = arith.constant 0 : index
    %0 = vector.load %arg1[%c0, %c0_0] : memref<8x4xi32, #tpu.memory_space<vmem>>, vector<8x4xi32>
    %c0_1 = arith.constant 0 : index
    %c0_2 = arith.constant 0 : index
    %1 = vector.load %arg2[%c0_1, %c0_2] : memref<256x128xf32, #tpu.memory_space<vmem>>, vector<256x128xf32>
    %2 = tpu.iota {dimensions = array<i32: 1>} : vector<8x256xi32>
    %3 = vector.extract_strided_slice %0 {offsets = [0, 0], sizes = [8, 1], strides = [1, 1]} : vector<8x4xi32> to vector<8x1xi32>
    %4 = vector.broadcast %3 : vector<8x1xi32> to vector<8x256xi32>
    %5 = arith.cmpi eq, %2, %4 : vector<8x256xi32>
    %6 = vector.extract_strided_slice %0 {offsets = [0, 1], sizes = [8, 1], strides = [1, 1]} : vector<8x4xi32> to vector<8x1xi32>
    %7 = vector.broadcast %6 : vector<8x1xi32> to vector<8x256xi32>
    %8 = arith.cmpi eq, %2, %7 : vector<8x256xi32>
    %9 = arith.ori %5, %8 : vector<8x256xi1>
    %10 = vector.extract_strided_slice %0 {offsets = [0, 2], sizes = [8, 1], strides = [1, 1]} : vector<8x4xi32> to vector<8x1xi32>
    %11 = vector.broadcast %10 : vector<8x1xi32> to vector<8x256xi32>
    %12 = arith.cmpi eq, %2, %11 : vector<8x256xi32>
    %13 = arith.ori %9, %12 : vector<8x256xi1>
    %14 = vector.extract_strided_slice %0 {offsets = [0, 3], sizes = [8, 1], strides = [1, 1]} : vector<8x4xi32> to vector<8x1xi32>
    %15 = vector.broadcast %14 : vector<8x1xi32> to vector<8x256xi32>
    %16 = arith.cmpi eq, %2, %15 : vector<8x256xi32>
    %17 = arith.ori %13, %16 : vector<8x256xi1>
    %18 = arith.extui %17 : vector<8x256xi1> to vector<8x256xi32>
    %19 = arith.sitofp %18 : vector<8x256xi32> to vector<8x256xf32>
    %cst = arith.constant dense<0.000000e+00> : vector<8x128xf32>
    %20 = tpu.matmul %19, %1, %cst {dimension_numbers = #tpu.dot_dimension_numbers<[1], [0], [0], [1], [0, 0, 1, 1], [], []>} : vector<8x256xf32>, vector<256x128xf32>, vector<8x128xf32> -> vector<8x128xf32>
    %c0_3 = arith.constant 0 : index
    %c0_4 = arith.constant 0 : index
    %21 = vector.load %arg3[%c0_3, %c0_4] : memref<8x128xf32, #tpu.memory_space<vmem>>, vector<8x128xf32>
    tpu.vector_store %arg3[%c0_3, %c0_4], %20 {strides = array<i32>} : memref<8x128xf32, #tpu.memory_space<vmem>>, vector<8x128xf32>,
    return
  }
  func.func @transform_0(%arg0: i32) -> (i32, i32) {
    %c0_i32 = arith.constant 0 : i32
    %c0_i32_0 = arith.constant 0 : i32
    return %arg0, %c0_i32 : i32, i32
  }
  func.func @transform_1(%arg0: i32) -> (i32, i32) {
    %c0_i32 = arith.constant 0 : i32
    %c0_i32_0 = arith.constant 0 : i32
    %c0_i32_1 = arith.constant 0 : i32
    return %c0_i32, %c0_i32_0 : i32, i32
  }
  func.func @transform_2(%arg0: i32) -> (i32, i32) {
    %c0_i32 = arith.constant 0 : i32
    %c0_i32_0 = arith.constant 0 : i32
    return %arg0, %c0_i32 : i32, i32
  }
}

</mosaic_0001>

<llo_original>
// kernel: tpu_custom_call.1
$region0: #{tpu_custom_call.1}
  #allocation0 [shape = 'u32[]', space=smem, size = 0x4, offset = 0x4, fixed_abs, tag = 'smem constant byte address 0x4 - core index']
  #allocation1 [shape = 'u32[144,128]{1,0:T(1,128)}', space=vmem, size = 0x12000, scoped, tag = 'internal scratch']
  %s0 = inlined_call_operand.vmem [shape: s32[8,4], index: 0, kind: input, shape index: {}]
  %s1 = inlined_call_operand.hbm [shape: f32[256,128], index: 1, kind: input, shape index: {}]
  %s2 = inlined_call_operand.hbm [shape: f32[8,128], index: 2, kind: output, shape index: {}]
  %s3 = sld [smem:[#allocation0]]
  $region22: #{tpu_custom_call.1} parent=0
    _
  %s5 = ssub.s32 1, %s3
  %s6 = scalar_select 0, %s5, %s3
  $region1: #{tpu_custom_call.1} parent=0
    #allocation2 [shape = 'u8[131072]{0}', space=vmem, size = 0x20000, scoped, tag = 'input window, operand 1, single buffered']
    #allocation3 [shape = 's32[1]{0}', space=sflag, size = 0x4, scoped, tag = 'scoped memory for tpu_custom_call.1']
    #allocation4 [shape = 's32[1]{0}', space=sflag, size = 0x4, scoped, tag = 'scoped memory for tpu_custom_call.1']
    #allocation5 [shape = 'u8[4096]{0}', space=vmem, size = 0x1000, scoped, tag = 'output window, operand 0, single buffered']
    %7 = vsyncpa [#allocation3], 0
    %8 = vsyncpa [#allocation4], 0
    // Predicated region
    $region2: #{tpu_custom_call.1} parent=1 // pred_check
      _
    $region3: #{tpu_custom_call.1} parent=1 // pred_check_branch
      %10 = sbr.rel (0) target = $region5
    $region4: #{tpu_custom_call.1} parent=1 // pred_region
      _
    $region5: #{tpu_custom_call.1} parent=1 // pred_fallthru
      _
    // Predicated region
    $region6: #{tpu_custom_call.1} parent=1 // pred_check
      _
    $region7: #{tpu_custom_call.1} parent=1 // pred_check_branch
      %12 = sbr.rel (0) target = $region9
    $region8: #{tpu_custom_call.1} parent=1 // pred_region
      %s14 = ssub.s32 4096, 4096
      %15 = vsyncadd [#allocation3], %s14
      %s16 = sshll.u32 [#allocation2], 4
      %s17 = int_to_ptr.vmem [resolvable:$true] %s16
      %22 = dma.hbm_to_vmem [thread:$0]  %s1, 4096, %s17, [#allocation3], 128, 128, 8
    $region9: #{tpu_custom_call.1} parent=1 // pred_fallthru
      _
    // Predicated region
    $region10: #{tpu_custom_call.1} parent=1 // pred_check
      _
    $region11: #{tpu_custom_call.1} parent=1 // pred_check_branch
      %24 = sbr.rel (0) target = $region13
    $region12: #{tpu_custom_call.1} parent=1 // pred_region
      %25 = dma.done [#allocation3], 4096
    $region13: #{tpu_custom_call.1} parent=1 // pred_fallthru
      _
    %v26 = vld [vmem:[%s0] sm:$0xff]
    %v27 = vld [vmem:[#allocation2] sm:$0xff]
    %v28 = vld [vmem:[#allocation2 + $0x8] sm:$0xff]
    %v29 = vld [vmem:[#allocation2 + $0x10] sm:$0xff]
    %v30 = vld [vmem:[#allocation2 + $0x18] sm:$0xff]
    %v31 = vld [vmem:[#allocation2 + $0x20] sm:$0xff]
    %v32 = vld [vmem:[#allocation2 + $0x28] sm:$0xff]
    %v33 = vld [vmem:[#allocation2 + $0x30] sm:$0xff]
    %v34 = vld [vmem:[#allocation2 + $0x38] sm:$0xff]
    %v35 = vld [vmem:[#allocation2 + $0x40] sm:$0xff]
    %v36 = vld [vmem:[#allocation2 + $0x48] sm:$0xff]
    %v37 = vld [vmem:[#allocation2 + $0x50] sm:$0xff]
    %v38 = vld [vmem:[#allocation2 + $0x58] sm:$0xff]
    %v39 = vld [vmem:[#allocation2 + $0x60] sm:$0xff]
    %v40 = vld [vmem:[#allocation2 + $0x68] sm:$0xff]
    %v41 = vld [vmem:[#allocation2 + $0x70] sm:$0xff]
    %v42 = vld [vmem:[#allocation2 + $0x78] sm:$0xff]
    %v43 = vld [vmem:[#allocation2 + $0x80] sm:$0xff]
    %v44 = vld [vmem:[#allocation2 + $0x88] sm:$0xff]
    %v45 = vld [vmem:[#allocation2 + $0x90] sm:$0xff]
    %v46 = vld [vmem:[#allocation2 + $0x98] sm:$0xff]
    %v47 = vld [vmem:[#allocation2 + $0xa0] sm:$0xff]
    %v48 = vld [vmem:[#allocation2 + $0xa8] sm:$0xff]
    %v49 = vld [vmem:[#allocation2 + $0xb0] sm:$0xff]
    %v50 = vld [vmem:[#allocation2 + $0xb8] sm:$0xff]
    %v51 = vld [vmem:[#allocation2 + $0xc0] sm:$0xff]
    %v52 = vld [vmem:[#allocation2 + $0xc8] sm:$0xff]
    %v53 = vld [vmem:[#allocation2 + $0xd0] sm:$0xff]
    %v54 = vld [vmem:[#allocation2 + $0xd8] sm:$0xff]
    %v55 = vld [vmem:[#allocation2 + $0xe0] sm:$0xff]
    %v56 = vld [vmem:[#allocation2 + $0xe8] sm:$0xff]
    %v57 = vld [vmem:[#allocation2 + $0xf0] sm:$0xff]
    %v58 = vld [vmem:[#allocation2 + $0xf8] sm:$0xff]
    %v59 = vlaneseq
    %v60 = vand.u32 %v59, 127
    %v61 = vadd.s32 %v60, 128
    %62 = vset.pattern.permute.xlu0 0
    %63 = vperm.xlu0 %62, %v26
    %v64 = vpop.permute.xlu0 %63
    %vm65 = vcmp.eq.s32.totalorder %v60, %v64
    %vm66 = vcmp.eq.s32.totalorder %v61, %v64
    %67 = vset.pattern.permute.xlu0 1
    %68 = vperm.xlu0 %67, %v26
    %v69 = vpop.permute.xlu0 %68
    %vm70 = vcmp.eq.s32.totalorder %v60, %v69
    %vm71 = vcmp.eq.s32.totalorder %v61, %v69
    %vm72 = vmor %vm65, %vm70
    %vm73 = vmor %vm66, %vm71
    %74 = vset.pattern.permute.xlu0 2
    %75 = vperm.xlu0 %74, %v26
    %v76 = vpop.permute.xlu0 %75
    %vm77 = vcmp.eq.s32.totalorder %v60, %v76
    %vm78 = vcmp.eq.s32.totalorder %v61, %v76
    %vm79 = vmor %vm72, %vm77
    %vm80 = vmor %vm73, %vm78
    %81 = vset.pattern.permute.xlu0 3
    %82 = vperm.xlu0 %81, %v26
    %v83 = vpop.permute.xlu0 %82
    %vm84 = vcmp.eq.s32.totalorder %v60, %v83
    %vm85 = vcmp.eq.s32.totalorder %v61, %v83
    %vm86 = vmor %vm79, %vm84
    %vm87 = vmor %vm80, %vm85
    %v88 = vsel %vm86, 1, 0
    %v89 = vsel %vm87, 1, 0
    %v90 = vcvt.s32.f32 %v88
    %v91 = vcvt.s32.f32 %v89
    %92 = vmatprep.subr.mxu0 0.0
    %93 = vmatpush1.msra.mxu0 %v27
    %94 = vmatprep.subr.mxu0 0.0
    %95 = vmatpush1.msra.mxu0 %v28
    %96 = vmatprep.subr.mxu0 0.0
    %97 = vmatpush1.msra.mxu0 %v29
    %98 = vmatprep.subr.mxu0 0.0
    %99 = vmatpush1.msra.mxu0 %v30
    %100 = vmatprep.subr.mxu0 0.0
    %101 = vmatpush1.msra.mxu0 %v31
    %102 = vmatprep.subr.mxu0 0.0
    %103 = vmatpush1.msra.mxu0 %v32
    %104 = vmatprep.subr.mxu0 0.0
    %105 = vmatpush1.msra.mxu0 %v33
    %106 = vmatprep.subr.mxu0 0.0
    %107 = vmatpush1.msra.mxu0 %v34
    %108 = vmatprep.subr.mxu0 0.0
    %109 = vmatpush1.msra.mxu0 %v35
    %110 = vmatprep.subr.mxu0 0.0
    %111 = vmatpush1.msra.mxu0 %v36
    %112 = vmatprep.subr.mxu0 0.0
    %113 = vmatpush1.msra.mxu0 %v37
    %114 = vmatprep.subr.mxu0 0.0
    %115 = vmatpush1.msra.mxu0 %v38
    %116 = vmatprep.subr.mxu0 0.0
    %117 = vmatpush1.msra.mxu0 %v39
    %118 = vmatprep.subr.mxu0 0.0
    %119 = vmatpush1.msra.mxu0 %v40
    %120 = vmatprep.subr.mxu0 0.0
    %121 = vmatpush1.msra.mxu0 %v41
    %122 = vmatprep.subr.mxu0 0.0
    %123 = vmatpush1.msra.mxu0 %v42
    %124 = vmatprep.subr.mxu0 0.0
    %125 = vmatpush1.msra.mxu0 %v43
    %126 = vmatprep.subr.mxu0 0.0
    %127 = vmatpush1.msra.mxu0 %v44
    %128 = vmatprep.subr.mxu0 0.0
    %129 = vmatpush1.msra.mxu0 %v45
    %130 = vmatprep.subr.mxu0 0.0
    %131 = vmatpush1.msra.mxu0 %v46
    %132 = vmatprep.subr.mxu0 0.0
    %133 = vmatpush1.msra.mxu0 %v47
    %134 = vmatprep.subr.mxu0 0.0
    %135 = vmatpush1.msra.mxu0 %v48
    %136 = vmatprep.subr.mxu0 0.0
    %137 = vmatpush1.msra.mxu0 %v49
    %138 = vmatprep.subr.mxu0 0.0
    %139 = vmatpush1.msra.mxu0 %v50
    %140 = vmatprep.subr.mxu0 0.0
    %141 = vmatpush1.msra.mxu0 %v51
    %142 = vmatprep.subr.mxu0 0.0
    %143 = vmatpush1.msra.mxu0 %v52
    %144 = vmatprep.subr.mxu0 0.0
    %145 = vmatpush1.msra.mxu0 %v53
    %146 = vmatprep.subr.mxu0 0.0
    %147 = vmatpush1.msra.mxu0 %v54
    %148 = vmatprep.subr.mxu0 0.0
    %149 = vmatpush1.msra.mxu0 %v55
    %150 = vmatprep.subr.mxu0 0.0
    %151 = vmatpush1.msra.mxu0 %v56
    %152 = vmatprep.subr.mxu0 0.0
    %153 = vmatpush1.msra.mxu0 %v57
    %154 = vmatprep.subr.mxu0 0.0
    %155 = vmatpush1.msra.mxu0 %v58
    %156 = vmatprep.mubr.f32.mxu0 %v91
    %157 = vmatmul.mubr.f32.gmra.mrb[0].mxu0 %v90
    %v158 = vpop.f32.mrb[0].mxu0
    %v159 = vadd.f32 0.0, %v158
    %v160 = vpop.f32.mrb[0].mxu0
    %161 = vdwg.mxu0
    %162 = vst [vmem:[#allocation5] sm:$0xff] %v159
    // Predicated region
    $region14: #{tpu_custom_call.1} parent=1 // pred_check
      _
    $region15: #{tpu_custom_call.1} parent=1 // pred_check_branch
      %164 = sbr.rel (0) target = $region17
    $region16: #{tpu_custom_call.1} parent=1 // pred_region
      %s166 = ssub.s32 128, 128
      %167 = vsyncadd [#allocation4], %s166
      %s169 = sshll.u32 [#allocation5], 4
      %s170 = int_to_ptr.vmem [resolvable:$true] %s169
      %172 = dma.vmem_to_hbm [thread:$0]  %s170, 128, %s2, [#allocation4]
    $region17: #{tpu_custom_call.1} parent=1 // pred_fallthru
      _
    // Predicated region
    $region18: #{tpu_custom_call.1} parent=1 // pred_check
      _
    $region19: #{tpu_custom_call.1} parent=1 // pred_check_branch
      %174 = sbr.rel (0) target = $region21
    $region20: #{tpu_custom_call.1} parent=1 // pred_region
      %175 = dma.done [#allocation4], 128
    $region21: #{tpu_custom_call.1} parent=1 // pred_fallthru
      _
    %176 = vsyncpa [#allocation3], 1
    %177 = vsyncpa [#allocation4], 1

</llo_original>
